<compile_context>
chip_gen: v6e
topology: v6e:2x2x1
jax: 0.10.0
libtpu: 0.0.40
codegen_flags: <defaults>
</compile_context>

<pallas_src>
import jax
import jax.numpy as jnp
from jax.experimental import pallas as pl
from jax.experimental.pallas import tpu as pltpu


# Split the copy into this many DMA chunks when the flat size divides evenly
# and each chunk is non-trivial.  2 chunks -> one per TensorCore on v7x.
_NUM_CHUNKS = 2
_MIN_CHUNK_ELEMS = 1024


def _dma_copy_kernel(x_hbm, o_hbm, sem):
    """Direct HBM->HBM copy of chunk `i` of the flat buffer via async DMA."""
    i = pl.program_id(0)
    cp = pltpu.make_async_copy(x_hbm.at[i], o_hbm.at[i], sem)
    cp.start()
    cp.wait()


def _im2im_pallas_copy(x):
    """Explicit identity *copy* through a Pallas kernel (HBM->HBM DMA).

    Always returns a fresh buffer with the same contents/shape/dtype as x.
    """
    if x.size == 0:
        return jnp.copy(x)

    n = x.size
    if n % _NUM_CHUNKS == 0 and (n // _NUM_CHUNKS) >= _MIN_CHUNK_ELEMS:
        num_chunks = _NUM_CHUNKS
    else:
        num_chunks = 1

    flat = x.reshape(num_chunks, n // num_chunks)

    out = pl.pallas_call(
        _dma_copy_kernel,
        out_shape=jax.ShapeDtypeStruct(flat.shape, flat.dtype),
        grid=(num_chunks,),
        in_specs=[pl.BlockSpec(memory_space=pl.ANY)],
        out_specs=pl.BlockSpec(memory_space=pl.ANY),
        scratch_shapes=[pltpu.SemaphoreType.DMA(())],
        compiler_params=pltpu.CompilerParams(
            dimension_semantics=("parallel",),
        ),
    )(flat)

    return out.reshape(x.shape)


# Jit-wrapped so the reshape plumbing stays metadata-only inside one XLA
# computation.  No donation: the function's contract is "independent copy".
im2im_pallas_copy = jax.jit(_im2im_pallas_copy)


def im2im_forward(x: jax.Array) -> jax.Array:
    """Identity forward pass (Im2Im).

    The module is a pure identity, so the fastest correct implementation is to
    return the input unchanged (zero HBM traffic).
    """
    return x


class Im2Im:
    """JAX/Pallas port of the PyTorch Im2Im module (pure identity)."""

    def __init__(self, in_channels, **kwargs):
        # No parameters — the module only records out_channels.
        self.out_channels = in_channels

    def __call__(self, x):
        return im2im_forward(x)


if __name__ == "__main__":
    key = jax.random.PRNGKey(0)
    # NCHW, small shapes: batch=2, channels=4, H=W=16
    x = jax.random.normal(key, (2, 4, 16, 16), dtype=jnp.float32)

    # Module forward (optimal identity path).
    model = Im2Im(in_channels=4)
    y = model(x)
    y = jax.block_until_ready(y)

    # Explicit Pallas copy kernel (direct HBM->HBM DMA, 2-way parallel grid).
    y_copy = im2im_pallas_copy(x)
    y_copy = jax.block_until_ready(y_copy)

    assert y.shape == x.shape and y.dtype == x.dtype
    assert y_copy.shape == x.shape and y_copy.dtype == x.dtype
    assert bool(jnp.all(y == x))
    assert bool(jnp.all(y_copy == x))
    print("KERNEL_OK")
</pallas_src>

<mosaic_0001>
module attributes {stable_mosaic.version = 11 : i64} {
  func.func @_dma_copy_kernel(%arg0: i32, %arg1: memref<2x1024xf32, #tpu.memory_space<any>>, %arg2: memref<2x1024xf32, #tpu.memory_space<any>>, %arg3: memref<!tpu.dma_semaphore, #tpu.memory_space<semaphore_mem>>) attributes {dimension_semantics = [#tpu.dimension_semantics<parallel>], iteration_bounds = array<i64: 2>, scalar_prefetch = 0 : i64, scratch_operands = 1 : i64, tpu.core_type = #tpu.core_type<tc>, window_params = [{}, {}]} {
    %c0_i32 = arith.constant 0 : i32
    %0 = tpu.memref_slice %arg1[%arg0, %c0_i32] : memref<2x1024xf32, #tpu.memory_space<any>> -> memref<1x1024xf32, #tpu.memory_space<any>>
    %1 = tpu.memref_squeeze %0 : memref<1x1024xf32, #tpu.memory_space<any>> -> memref<1024xf32, #tpu.memory_space<any>>
    %c0_i32_0 = arith.constant 0 : i32
    %2 = tpu.memref_slice %arg2[%arg0, %c0_i32_0] : memref<2x1024xf32, #tpu.memory_space<any>> -> memref<1x1024xf32, #tpu.memory_space<any>>
    %3 = tpu.memref_squeeze %2 : memref<1x1024xf32, #tpu.memory_space<any>> -> memref<1024xf32, #tpu.memory_space<any>>
    tpu.enqueue_dma source(%1 : memref<1024xf32, #tpu.memory_space<any>>) target(%3 : memref<1024xf32, #tpu.memory_space<any>>) target_semaphore(%arg3 : memref<!tpu.dma_semaphore, #tpu.memory_space<semaphore_mem>>)
    %c0_i32_1 = arith.constant 0 : i32
    %4 = tpu.memref_slice %arg1[%arg0, %c0_i32_1] : memref<2x1024xf32, #tpu.memory_space<any>> -> memref<1x1024xf32, #tpu.memory_space<any>>
    %5 = tpu.memref_squeeze %4 : memref<1x1024xf32, #tpu.memory_space<any>> -> memref<1024xf32, #tpu.memory_space<any>>
    %c0_i32_2 = arith.constant 0 : i32
    %6 = tpu.memref_slice %arg2[%arg0, %c0_i32_2] : memref<2x1024xf32, #tpu.memory_space<any>> -> memref<1x1024xf32, #tpu.memory_space<any>>
    %7 = tpu.memref_squeeze %6 : memref<1x1024xf32, #tpu.memory_space<any>> -> memref<1024xf32, #tpu.memory_space<any>>
    tpu.wait_dma2 semaphore(%arg3 : memref<!tpu.dma_semaphore, #tpu.memory_space<semaphore_mem>>) src(%5 : memref<1024xf32, #tpu.memory_space<any>>) dst(%7 : memref<1024xf32, #tpu.memory_space<any>>)
    return
  }
}

</mosaic_0001>

<llo_original>
// kernel: _im2im_pallas_copy.1
$region0: #{_im2im_pallas_copy.1}
  #allocation0 [shape = 'u32[]', space=smem, size = 0x4, offset = 0x4, fixed_abs, tag = 'smem constant byte address 0x4 - core index']
  #allocation1 [shape = 'u32[144,128]{1,0:T(1,128)}', space=vmem, size = 0x12000, scoped, tag = 'internal scratch']
  #allocation2 [shape = 's32[1]{0}', space=sflag, size = 0x4, scoped, tag = 'scratch operand']
  #allocation3 [shape = 's32[]', space=sflag, size = 0x4, offset = 0, fixed_abs, tag = 'sflag constant byte address 0x0 - dummy sync flag']
  %s0 = inlined_call_operand.vmem [shape: f32[2,1024], index: 0, kind: input, shape index: {}]
  %s1 = inlined_call_operand.vmem [shape: f32[2,1024], index: 1, kind: output, shape index: {}]
  %s2 = sld [smem:[#allocation0]]
  $region46: #{_im2im_pallas_copy.1} parent=0
    _
  %s4 = ssub.s32 1, %s2
  %s5 = scalar_select 0, %s4, %s2
  loop: start=0, step=1, limit=2
  $region2: #{_im2im_pallas_copy.1} parent=0 // loop_pre_header
    _
  $region3: #{_im2im_pallas_copy.1} parent=0 // loop_header
    %s7 = sphi 0, %s11
    %p8 = scmp.ge.s32.totalorder %s7, 2
  $region4: #{_im2im_pallas_copy.1} parent=0 // loop_header_branch
    %10 = sbr.rel (%p8) target = $region8
  $region5: #{_im2im_pallas_copy.1} parent=0 // loop_body
    %s12 = sadd.s32 %s7, 1
    %s13 = sshrl.u32 %s7, 1
    %s14 = sand.u32 %s7, 1
    %s15 = smul.u32 %s13, 16
    %s16 = sadd.s32 %s14, %s15
    %s17 = scalar_lea.vmem %s0, %s16
    %s18 = scalar_lea.vmem %s1, %s16
    %p20 = scmp.lt.u32.totalorder 1, 8
    %p21 = pneg %p20
    // Predicated region
    $region9: #{_im2im_pallas_copy.1} parent=5 // pred_check
      _
    $region10: #{_im2im_pallas_copy.1} parent=5 // pred_check_branch
      %23 = sbr.rel (%p20) target = $region12
    $region11: #{_im2im_pallas_copy.1} parent=5 // pred_region
      %s53 = sand.u32 1, 7
      %p54 = scmp.eq.s32.totalorder %s53, 0
      %p55 = pneg %p54
      // Predicated region
      $region24: #{_im2im_pallas_copy.1} parent=11 // pred_check
        _
      $region25: #{_im2im_pallas_copy.1} parent=11 // pred_check_branch
        %57 = sbr.rel (%p54) target = $region27
      $region26: #{_im2im_pallas_copy.1} parent=11 // pred_region
        %s58 = sand.u32 1, 7
        %s59 = ssub.s32 1, %s58
        %s60 = scalar_lea.vmem %s17, %s59
        %s61 = ssub.s32 1, %s58
        %s62 = scalar_lea.vmem %s18, %s61
        loop: start=0, step=1, limit=1
        $region28: #{_im2im_pallas_copy.1} parent=26 // loop_pre_header
          _
        $region29: #{_im2im_pallas_copy.1} parent=26 // loop_header
          %s64 = sphi 0, %s68
          %p65 = scmp.ge.s32.totalorder %s64, 1
          %s69 = sphi %s17, %s17
          %s70 = sphi %s18, %s18
        $region30: #{_im2im_pallas_copy.1} parent=26 // loop_header_branch
          %67 = sbr.rel (%p65) target = $region34
        $region31: #{_im2im_pallas_copy.1} parent=26 // loop_body
          _
        $region32: #{_im2im_pallas_copy.1} parent=26 // loop_footer
          %s68 = sadd.s32 1, %s64
        $region33: #{_im2im_pallas_copy.1} parent=26 // loop_footer_branch
          %63 = sbr.rel target = $region29
        $region34: #{_im2im_pallas_copy.1} parent=26 // loop_exit
          _
        %s71 = sshll.u32 1, %s58
        %s72 = ssub.s32 %s71, 1
        loop: start=0, step=1, limit=1
        $region35: #{_im2im_pallas_copy.1} parent=26 // loop_pre_header
          _
        $region36: #{_im2im_pallas_copy.1} parent=26 // loop_header
          %s74 = sphi 0, %s78
          %p75 = scmp.ge.s32.totalorder %s74, 1
          %s79 = sphi %s60, %s60
          %s80 = sphi %s62, %s62
        $region37: #{_im2im_pallas_copy.1} parent=26 // loop_header_branch
          %77 = sbr.rel (%p75) target = $region41
        $region38: #{_im2im_pallas_copy.1} parent=26 // loop_body
          %v81 = vld [vmem:[%s79] sm:%s72]
          %82 = vst [vmem:[%s80] sm:%s72] %v81
          %v83 = vld [vmem:[%s79 + $0x2] sm:%s72]
          %84 = vst [vmem:[%s80 + $0x2] sm:%s72] %v83
          %v85 = vld [vmem:[%s79 + $0x4] sm:%s72]
          %86 = vst [vmem:[%s80 + $0x4] sm:%s72] %v85
          %v87 = vld [vmem:[%s79 + $0x6] sm:%s72]
          %88 = vst [vmem:[%s80 + $0x6] sm:%s72] %v87
          %v89 = vld [vmem:[%s79 + $0x8] sm:%s72]
          %90 = vst [vmem:[%s80 + $0x8] sm:%s72] %v89
          %v91 = vld [vmem:[%s79 + $0xa] sm:%s72]
          %92 = vst [vmem:[%s80 + $0xa] sm:%s72] %v91
          %v93 = vld [vmem:[%s79 + $0xc] sm:%s72]
          %94 = vst [vmem:[%s80 + $0xc] sm:%s72] %v93
          %v95 = vld [vmem:[%s79 + $0xe] sm:%s72]
          %96 = vst [vmem:[%s80 + $0xe] sm:%s72] %v95
        $region39: #{_im2im_pallas_copy.1} parent=26 // loop_footer
          %s78 = sadd.s32 1, %s74
        $region40: #{_im2im_pallas_copy.1} parent=26 // loop_footer_branch
          %73 = sbr.rel target = $region36
        $region41: #{_im2im_pallas_copy.1} parent=26 // loop_exit
          _
      $region27: #{_im2im_pallas_copy.1} parent=11 // pred_fallthru
        _
    $region12: #{_im2im_pallas_copy.1} parent=5 // pred_fallthru
      _
    // Predicated region
    $region13: #{_im2im_pallas_copy.1} parent=5 // pred_check
      %p24 = pneg %p20
    $region14: #{_im2im_pallas_copy.1} parent=5 // pred_check_branch
      %26 = sbr.rel (%p24) target = $region16
    $region15: #{_im2im_pallas_copy.1} parent=5 // pred_region
      %s27 = sshll.u32 1, 1
      %s28 = ssub.s32 %s27, 1
      loop: start=0, step=1, limit=1
      $region17: #{_im2im_pallas_copy.1} parent=15 // loop_pre_header
        _
      $region18: #{_im2im_pallas_copy.1} parent=15 // loop_header
        %s30 = sphi 0, %s34
        %p31 = scmp.ge.s32.totalorder %s30, 1
        %s35 = sphi %s17, %s17
        %s36 = sphi %s18, %s18
      $region19: #{_im2im_pallas_copy.1} parent=15 // loop_header_branch
        %33 = sbr.rel (%p31) target = $region23
      $region20: #{_im2im_pallas_copy.1} parent=15 // loop_body
        %v37 = vld [vmem:[%s35] sm:%s28]
        %38 = vst [vmem:[%s36] sm:%s28] %v37
        %v39 = vld [vmem:[%s35 + $0x2] sm:%s28]
        %40 = vst [vmem:[%s36 + $0x2] sm:%s28] %v39
        %v41 = vld [vmem:[%s35 + $0x4] sm:%s28]
        %42 = vst [vmem:[%s36 + $0x4] sm:%s28] %v41
        %v43 = vld [vmem:[%s35 + $0x6] sm:%s28]
        %44 = vst [vmem:[%s36 + $0x6] sm:%s28] %v43
        %v45 = vld [vmem:[%s35 + $0x8] sm:%s28]
        %46 = vst [vmem:[%s36 + $0x8] sm:%s28] %v45
        %v47 = vld [vmem:[%s35 + $0xa] sm:%s28]
        %48 = vst [vmem:[%s36 + $0xa] sm:%s28] %v47
        %v49 = vld [vmem:[%s35 + $0xc] sm:%s28]
        %50 = vst [vmem:[%s36 + $0xc] sm:%s28] %v49
        %v51 = vld [vmem:[%s35 + $0xe] sm:%s28]
        %52 = vst [vmem:[%s36 + $0xe] sm:%s28] %v51
      $region21: #{_im2im_pallas_copy.1} parent=15 // loop_footer
        %s34 = sadd.s32 1, %s30
      $region22: #{_im2im_pallas_copy.1} parent=15 // loop_footer_branch
        %29 = sbr.rel target = $region18
      $region23: #{_im2im_pallas_copy.1} parent=15 // loop_exit
        _
    $region16: #{_im2im_pallas_copy.1} parent=5 // pred_fallthru
      _
    // Predicated region
    $region42: #{_im2im_pallas_copy.1} parent=5 // pred_check
      _
    $region43: #{_im2im_pallas_copy.1} parent=5 // pred_check_branch
      %99 = sbr.rel (0) target = $region45
    $region44: #{_im2im_pallas_copy.1} parent=5 // pred_region
      %100 = vsyncadd [#allocation2], 128
    $region45: #{_im2im_pallas_copy.1} parent=5 // pred_fallthru
      _
    %102 = dma.done [#allocation2], 128
  $region6: #{_im2im_pallas_copy.1} parent=0 // loop_footer
    %s11 = sadd.s32 1, %s7
  $region7: #{_im2im_pallas_copy.1} parent=0 // loop_footer_branch
    %6 = sbr.rel target = $region3
  $region8: #{_im2im_pallas_copy.1} parent=0 // loop_exit
    _
  %103 = vsyncmov [#allocation2]
  %s104 = vpop.sfrf %103
  %p105 = scmp.eq.s32.totalorder %s104, 0
  %p106 = pneg %p105
  %108 = shalt.err (%p106)

</llo_original>
